<compile_context>
chip_gen: v7x
topology: tpu7x:2x2x1
jax: 0.10.0
libtpu: 0.0.40
codegen_flags: <defaults>
</compile_context>

<pallas_src>
import math
from functools import partial

import jax
import jax.numpy as jnp
from jax.experimental import pallas as pl
from jax.experimental.pallas import tpu as pltpu


def _wingnn_kernel(a_ref, x_ref,
                   wc0_ref, b0_ref, wc1_ref, b1_ref,
                   w1t_ref, w2t_ref,
                   emb_ref, score_ref):
    """Fused WinGNN forward: 2 GCN layers + L2-normalize + MLP head (per-node score)."""
    A = a_ref[...]                        # (N, N) bf16, resident in VMEM for both layers
    h = x_ref[...].astype(jnp.float32)    # (N, F_in)

    def gcn_layer(h, wcat_ref, b_ref):
        # aggregate: A_hat @ h   (bf16 operands, f32 accumulation on the MXU)
        agg = jnp.dot(A, h.astype(jnp.bfloat16),
                      preferred_element_type=jnp.float32)
        # fused message + skip linear:
        #   [agg | h] @ [W_msg^T ; W_skip^T] + (b_msg + b_skip)
        hcat = jnp.concatenate([agg, h], axis=-1).astype(jnp.bfloat16)
        return jnp.dot(hcat, wcat_ref[...],
                       preferred_element_type=jnp.float32) + b_ref[...]

    h = gcn_layer(h, wc0_ref, b0_ref)     # layer 0
    h = gcn_layer(h, wc1_ref, b1_ref)     # layer 1

    # F.normalize(x): x / max(||x||_2, 1e-12)  ==  x * rsqrt(max(sum(x^2), 1e-24))
    # (rsqrt goes to the EUP slot; only one VPU multiply on the critical path)
    sumsq = jnp.sum(h * h, axis=-1, keepdims=True)
    xn = h * jax.lax.rsqrt(jnp.maximum(sumsq, 1e-24))
    emb_ref[...] = xn                     # g.node_embedding

    # TODO(synk): F.dropout(p=0.1) is stochastic in the torch forward (training=True
    # default); implemented as inference-mode identity here.
    p1 = jnp.maximum(
        jnp.dot(xn.astype(jnp.bfloat16), w1t_ref[...],
                preferred_element_type=jnp.float32), 0.0)          # relu(x @ W1^T)
    logit = jnp.dot(p1.astype(jnp.bfloat16), w2t_ref[...],
                    preferred_element_type=jnp.float32)            # (N, 1)
    score_ref[...] = jax.nn.sigmoid(logit)


def wingnn_pallas(a_hat_bf16, x, params):
    """Single pallas_call running the whole WinGNN forward on a VMEM-resident graph."""
    n = x.shape[0]
    (wc0, b0), (wc1, b1) = params["gcn"]
    d_out = wc1.shape[1]

    def vmem():
        return pl.BlockSpec(memory_space=pltpu.MemorySpace.VMEM)

    return pl.pallas_call(
        _wingnn_kernel,
        out_shape=(jax.ShapeDtypeStruct((n, d_out), jnp.float32),   # node embedding
                   jax.ShapeDtypeStruct((n, 1), jnp.float32)),      # per-node score
        in_specs=[vmem() for _ in range(8)],
        out_specs=(vmem(), vmem()),
        compiler_params=pltpu.CompilerParams(
            vmem_limit_bytes=48 * 1024 * 1024),
    )(a_hat_bf16, x, wc0, b0, wc1, b1, params["w1t"], params["w2t"])


def build_gcn_adjacency(edge_index, num_nodes):
    """A_hat[dst, src] = deg^{-1/2}[dst] * deg^{-1/2}[src] per edge.

    Matches GCNLayer.norm: deg is the out-degree computed from the edge src list,
    no self loops are added, and deg==0 -> 0 (inf clamped).
    """
    src, dst = edge_index[0], edge_index[1]
    A = jnp.zeros((num_nodes, num_nodes), jnp.float32).at[dst, src].add(1.0)
    deg = jnp.zeros((num_nodes,), jnp.float32).at[src].add(1.0)
    d_inv_sqrt = jnp.where(deg > 0, 1.0 / jnp.sqrt(deg), 0.0)
    return A * d_inv_sqrt[:, None] * d_inv_sqrt[None, :]


def _xavier_normal(key, out_dim, in_dim, gain):
    std = gain * math.sqrt(2.0 / (in_dim + out_dim))
    return std * jax.random.normal(key, (out_dim, in_dim), jnp.float32)


def init_wingnn_params(key, in_features, out_features, hidden_dim, num_layers):
    """xavier_normal(gain=relu) weights, zero GCN biases — matches reset_parameters."""
    gain = math.sqrt(2.0)  # nn.init.calculate_gain('relu')
    gcn = []
    for i in range(num_layers):
        d_in = in_features if i == 0 else out_features
        key, k_skip, k_msg = jax.random.split(key, 3)
        w_skip = _xavier_normal(k_skip, out_features, d_in, gain)   # (out, in)
        w_msg = _xavier_normal(k_msg, out_features, d_in, gain)     # (out, in)
        b_skip = jnp.zeros((out_features,), jnp.float32)
        b_msg = jnp.zeros((out_features,), jnp.float32)
        # fuse: [rst | feats] @ concat([W_msg^T, W_skip^T], axis=0) + (b_msg + b_skip)
        wcat = jnp.concatenate([w_msg.T, w_skip.T], axis=0).astype(jnp.bfloat16)
        bias = (b_msg + b_skip).reshape(1, out_features)
        gcn.append((wcat, bias))
    key, k1, k2 = jax.random.split(key, 3)
    weight1 = _xavier_normal(k1, hidden_dim, out_features, gain)    # (hidden, out)
    weight2 = _xavier_normal(k2, 1, hidden_dim, gain)               # (1, hidden)
    return {
        "gcn": gcn,
        "w1t": weight1.T.astype(jnp.bfloat16),   # (out_features, hidden)
        "w2t": weight2.T.astype(jnp.bfloat16),   # (hidden, 1)
    }


@jax.jit
def wingnn_forward(x, edge_index, edge_label_index, params):
    """Equivalent of WinGNN.forward: returns (pred per label edge, node_embedding).

    TODO(synk): the torch forward iterates self.children() (which would also hit the
    CosineSimilarity module) and slices `fast_weights`; here the module's own
    parameters are used for the intended num_layers GCN layers + head.
    """
    num_nodes = x.shape[0]
    a_hat = build_gcn_adjacency(edge_index, num_nodes).astype(jnp.bfloat16)
    node_embedding, score = wingnn_pallas(a_hat, x, params)

    # pred[g.edge_label_index] gather + CosineSimilarity(dim=-1) on (E, 1) vectors.
    s = score[:, 0]
    s1 = s[edge_label_index[0]]
    s2 = s[edge_label_index[1]]
    eps = 1e-8
    pred = (s1 * s2) / (jnp.maximum(jnp.abs(s1), eps) * jnp.maximum(jnp.abs(s2), eps))
    return pred, node_embedding


def _reference_forward(x, edge_index, edge_label_index, params):
    """Pure-JAX f32 reference (same algebra, no Pallas) for a sanity check."""
    num_nodes = x.shape[0]
    a_hat = build_gcn_adjacency(edge_index, num_nodes)
    h = x
    for wcat, bias in params["gcn"]:
        agg = a_hat @ h
        h = jnp.concatenate([agg, h], axis=-1) @ wcat.astype(jnp.float32) + bias
    nrm = jnp.sqrt(jnp.sum(h * h, axis=-1, keepdims=True))
    xn = h / jnp.maximum(nrm, 1e-12)
    p1 = jnp.maximum(xn @ params["w1t"].astype(jnp.float32), 0.0)
    s = jax.nn.sigmoid(p1 @ params["w2t"].astype(jnp.float32))[:, 0]
    s1, s2 = s[edge_label_index[0]], s[edge_label_index[1]]
    eps = 1e-8
    pred = (s1 * s2) / (jnp.maximum(jnp.abs(s1), eps) * jnp.maximum(jnp.abs(s2), eps))
    return pred, xn


if __name__ == "__main__":
    key = jax.random.PRNGKey(0)

    N = 128               # number of graph nodes (multiple of 8)
    IN_FEATURES = 64
    OUT_FEATURES = 128    # lane-dense hidden width (multiple of 128)
    HIDDEN_DIM = 128
    NUM_LAYERS = 2
    NUM_LABEL_EDGES = 16

    k_x, k_p = jax.random.split(key)
    x = jax.random.normal(k_x, (N, IN_FEATURES), jnp.float32)

    # deterministic bidirectional ring graph, (2, E) edge_index
    nodes = jnp.arange(N, dtype=jnp.int32)
    nxt = (nodes + 1) % N
    edge_index = jnp.concatenate(
        [jnp.stack([nodes, nxt], axis=0), jnp.stack([nxt, nodes], axis=0)], axis=1)

    # deterministic label edges to score
    first = jnp.arange(NUM_LABEL_EDGES, dtype=jnp.int32)
    second = (first + 5) % N
    edge_label_index = jnp.stack([first, second], axis=0)

    params = init_wingnn_params(k_p, IN_FEATURES, OUT_FEATURES, HIDDEN_DIM, NUM_LAYERS)

    pred, node_embedding = wingnn_forward(x, edge_index, edge_label_index, params)
    jax.block_until_ready((pred, node_embedding))
    assert pred.shape == (NUM_LABEL_EDGES,)
    assert node_embedding.shape == (N, OUT_FEATURES)

    # sanity check against the pure-JAX f32 reference (bf16 matmuls -> loose tol)
    ref_pred, ref_emb = _reference_forward(x, edge_index, edge_label_index, params)
    assert jnp.max(jnp.abs(node_embedding - ref_emb)) < 5e-2
    assert jnp.max(jnp.abs(pred - ref_pred)) < 5e-2

    print("KERNEL_OK")
</pallas_src>

<mosaic_0001>
module attributes {stable_mosaic.version = 11 : i64} {
  func.func private @main(%arg0: i32) attributes {dimension_semantics = [#tpu.dimension_semantics<core_parallel>], iteration_bounds = array<i64: 2>, tpu.core_type = #tpu.core_type<sc_scalar_subcore>, window_params = []} {
    return
  }
}

module attributes {stable_mosaic.version = 11 : i64} {
  func.func private @main(%arg0: i32) attributes {dimension_semantics = [#tpu.dimension_semantics<core_parallel>], iteration_bounds = array<i64: 2>, tpu.core_type = #tpu.core_type<sc_scalar_subcore>, window_params = []} {
    return
  }
}

module attributes {stable_mosaic.version = 11 : i64} {
  func.func @_wingnn_kernel(%arg0: memref<128x128xbf16, #tpu.memory_space<vmem>>, %arg1: memref<128x64xf32, #tpu.memory_space<vmem>>, %arg2: memref<128x128xbf16, #tpu.memory_space<vmem>>, %arg3: memref<1x128xf32, #tpu.memory_space<vmem>>, %arg4: memref<256x128xbf16, #tpu.memory_space<vmem>>, %arg5: memref<1x128xf32, #tpu.memory_space<vmem>>, %arg6: memref<128x128xbf16, #tpu.memory_space<vmem>>, %arg7: memref<128x1xbf16, #tpu.memory_space<vmem>>, %arg8: memref<128x128xf32, #tpu.memory_space<vmem>>, %arg9: memref<128x1xf32, #tpu.memory_space<vmem>>) attributes {dimension_semantics = [], scalar_prefetch = 0 : i64, scratch_operands = 0 : i64, tpu.core_type = #tpu.core_type<tc>} {
    %c0 = arith.constant 0 : index
    %c0_0 = arith.constant 0 : index
    %0 = vector.load %arg0[%c0, %c0_0] : memref<128x128xbf16, #tpu.memory_space<vmem>>, vector<128x128xbf16>
    %c0_1 = arith.constant 0 : index
    %c0_2 = arith.constant 0 : index
    %1 = vector.load %arg1[%c0_1, %c0_2] : memref<128x64xf32, #tpu.memory_space<vmem>>, vector<128x64xf32>
    %2 = arith.truncf %1 : vector<128x64xf32> to vector<128x64xbf16>
    %cst = arith.constant dense<0.000000e+00> : vector<128x64xf32>
    %3 = tpu.matmul %0, %2, %cst {dimension_numbers = #tpu.dot_dimension_numbers<[1], [0], [0], [1], [0, 0, 1, 1], [], []>} : vector<128x128xbf16>, vector<128x64xbf16>, vector<128x64xf32> -> vector<128x64xf32>
    %4 = tpu.concatenate %3, %1 in 1 : vector<128x64xf32>, vector<128x64xf32> -> vector<128x128xf32>
    %5 = arith.truncf %4 : vector<128x128xf32> to vector<128x128xbf16>
    %c0_3 = arith.constant 0 : index
    %c0_4 = arith.constant 0 : index
    %6 = vector.load %arg2[%c0_3, %c0_4] : memref<128x128xbf16, #tpu.memory_space<vmem>>, vector<128x128xbf16>
    %cst_5 = arith.constant dense<0.000000e+00> : vector<128x128xf32>
    %7 = tpu.matmul %5, %6, %cst_5 {dimension_numbers = #tpu.dot_dimension_numbers<[1], [0], [0], [1], [0, 0, 1, 1], [], []>} : vector<128x128xbf16>, vector<128x128xbf16>, vector<128x128xf32> -> vector<128x128xf32>
    %c0_6 = arith.constant 0 : index
    %c0_7 = arith.constant 0 : index
    %8 = vector.load %arg3[%c0_6, %c0_7] : memref<1x128xf32, #tpu.memory_space<vmem>>, vector<1x128xf32>
    %9 = vector.broadcast %8 : vector<1x128xf32> to vector<128x128xf32>
    %10 = arith.addf %7, %9 : vector<128x128xf32>
    %11 = arith.truncf %10 : vector<128x128xf32> to vector<128x128xbf16>
    %cst_8 = arith.constant dense<0.000000e+00> : vector<128x128xf32>
    %12 = tpu.matmul %0, %11, %cst_8 {dimension_numbers = #tpu.dot_dimension_numbers<[1], [0], [0], [1], [0, 0, 1, 1], [], []>} : vector<128x128xbf16>, vector<128x128xbf16>, vector<128x128xf32> -> vector<128x128xf32>
    %13 = tpu.concatenate %12, %10 in 1 : vector<128x128xf32>, vector<128x128xf32> -> vector<128x256xf32>
    %14 = arith.truncf %13 : vector<128x256xf32> to vector<128x256xbf16>
    %c0_9 = arith.constant 0 : index
    %c0_10 = arith.constant 0 : index
    %15 = vector.load %arg4[%c0_9, %c0_10] : memref<256x128xbf16, #tpu.memory_space<vmem>>, vector<256x128xbf16>
    %cst_11 = arith.constant dense<0.000000e+00> : vector<128x128xf32>
    %16 = tpu.matmul %14, %15, %cst_11 {dimension_numbers = #tpu.dot_dimension_numbers<[1], [0], [0], [1], [0, 0, 1, 1], [], []>} : vector<128x256xbf16>, vector<256x128xbf16>, vector<128x128xf32> -> vector<128x128xf32>
    %c0_12 = arith.constant 0 : index
    %c0_13 = arith.constant 0 : index
    %17 = vector.load %arg5[%c0_12, %c0_13] : memref<1x128xf32, #tpu.memory_space<vmem>>, vector<1x128xf32>
    %18 = vector.broadcast %17 : vector<1x128xf32> to vector<128x128xf32>
    %19 = arith.addf %16, %18 : vector<128x128xf32>
    %20 = arith.mulf %19, %19 : vector<128x128xf32>
    %cst_14 = arith.constant dense<0.000000e+00> : vector<128xf32>
    %21 = vector.multi_reduction <add>, %20, %cst_14 [1] : vector<128x128xf32> to vector<128xf32>
    %22 = vector.shape_cast %21 : vector<128xf32> to vector<128x1xf32>
    %cst_15 = arith.constant 1.000000e-24 : f32
    %23 = vector.broadcast %cst_15 : f32 to vector<128x1xf32>
    %24 = arith.maximumf %22, %23 : vector<128x1xf32>
    %25 = math.rsqrt %24 : vector<128x1xf32>
    %26 = vector.broadcast %25 : vector<128x1xf32> to vector<128x128xf32>
    %27 = arith.mulf %19, %26 : vector<128x128xf32>
    %c0_16 = arith.constant 0 : index
    %c0_17 = arith.constant 0 : index
    %28 = vector.load %arg8[%c0_16, %c0_17] : memref<128x128xf32, #tpu.memory_space<vmem>>, vector<128x128xf32>
    tpu.vector_store %arg8[%c0_16, %c0_17], %27 {strides = array<i32>} : memref<128x128xf32, #tpu.memory_space<vmem>>, vector<128x128xf32>,
    %29 = arith.truncf %27 : vector<128x128xf32> to vector<128x128xbf16>
    %c0_18 = arith.constant 0 : index
    %c0_19 = arith.constant 0 : index
    %30 = vector.load %arg6[%c0_18, %c0_19] : memref<128x128xbf16, #tpu.memory_space<vmem>>, vector<128x128xbf16>
    %cst_20 = arith.constant dense<0.000000e+00> : vector<128x128xf32>
    %31 = tpu.matmul %29, %30, %cst_20 {dimension_numbers = #tpu.dot_dimension_numbers<[1], [0], [0], [1], [0, 0, 1, 1], [], []>} : vector<128x128xbf16>, vector<128x128xbf16>, vector<128x128xf32> -> vector<128x128xf32>
    %cst_21 = arith.constant 0.000000e+00 : f32
    %32 = vector.broadcast %cst_21 : f32 to vector<128x128xf32>
    %33 = arith.maximumf %31, %32 : vector<128x128xf32>
    %34 = arith.truncf %33 : vector<128x128xf32> to vector<128x128xbf16>
    %c0_22 = arith.constant 0 : index
    %c0_23 = arith.constant 0 : index
    %35 = vector.load %arg7[%c0_22, %c0_23] : memref<128x1xbf16, #tpu.memory_space<vmem>>, vector<128x1xbf16>
    %cst_24 = arith.constant dense<0.000000e+00> : vector<128x1xf32>
    %36 = tpu.matmul %34, %35, %cst_24 {dimension_numbers = #tpu.dot_dimension_numbers<[1], [0], [0], [1], [0, 0, 1, 1], [], []>} : vector<128x128xbf16>, vector<128x1xbf16>, vector<128x1xf32> -> vector<128x1xf32>
    %37 = arith.negf %36 : vector<128x1xf32>
    %38 = math.exp %37 : vector<128x1xf32>
    %cst_25 = arith.constant 1.000000e+00 : f32
    %39 = vector.broadcast %cst_25 : f32 to vector<128x1xf32>
    %40 = arith.addf %39, %38 : vector<128x1xf32>
    %41 = arith.divf %39, %40 : vector<128x1xf32>
    %c0_26 = arith.constant 0 : index
    %c0_27 = arith.constant 0 : index
    %42 = vector.load %arg9[%c0_26, %c0_27] : memref<128x1xf32, #tpu.memory_space<vmem>>, vector<128x1xf32>
    tpu.vector_store %arg9[%c0_26, %c0_27], %41 {strides = array<i32>} : memref<128x1xf32, #tpu.memory_space<vmem>>, vector<128x1xf32>,
    return
  }
}

</mosaic_0001>

<llo_original>
// kernel: wingnn_forward.1
$region0: #{wingnn_forward.1}
  #allocation0 [shape = 'u32[]', space=smem, size = 0x4, offset = 0x4, fixed_abs, tag = 'smem constant byte address 0x4 - core index']
  #allocation1 [shape = 'u32[144,128]{1,0:T(1,128)}', space=vmem, size = 0x12000, scoped, tag = 'internal scratch']
  %s0 = inlined_call_operand.vmem [shape: bf16[128,128], index: 0, kind: input, shape index: {}]
  %s1 = inlined_call_operand.vmem [shape: f32[128,64], index: 1, kind: input, shape index: {}]
  %s2 = inlined_call_operand.vmem [shape: bf16[128,128], index: 2, kind: input, shape index: {}]
  %s3 = inlined_call_operand.vmem [shape: f32[1,128], index: 3, kind: input, shape index: {}]
  %s4 = inlined_call_operand.vmem [shape: bf16[256,128], index: 4, kind: input, shape index: {}]
  %s5 = inlined_call_operand.vmem [shape: f32[1,128], index: 5, kind: input, shape index: {}]
  %s6 = inlined_call_operand.vmem [shape: bf16[128,128], index: 6, kind: input, shape index: {}]
  %s7 = inlined_call_operand.vmem [shape: bf16[128,1], index: 7, kind: input, shape index: {}]
  %s8 = inlined_call_operand.hbm [shape: f32[128,128], index: 8, kind: output, shape index: {0}]
  %s9 = inlined_call_operand.vmem [shape: f32[128,1], index: 9, kind: output, shape index: {1}]
  %10 = xla_tuple %s8, %s9
  %s11 = sld [smem:[#allocation0]]
  $region50: #{wingnn_forward.1} parent=0
    _
  %s13 = ssub.s32 1, %s11
  %s14 = scalar_select 0, %s13, %s11
  $region1: #{wingnn_forward.1} parent=0
    #allocation2 [shape = 'u8[65536]{0}', space=vmem, size = 0x10000, scoped, tag = 'output window, operand 0, single buffered']
    #allocation3 [shape = 's32[1]{0}', space=sflag, size = 0x4, scoped, tag = 'scoped memory for wingnn_forward.1']
    %15 = vsyncpa [#allocation3], 0
    // Predicated region
    $region2: #{wingnn_forward.1} parent=1 // pred_check
      _
    $region3: #{wingnn_forward.1} parent=1 // pred_check_branch
      %17 = sbr.rel (0) target = $region5
    $region4: #{wingnn_forward.1} parent=1 // pred_region
      _
    $region5: #{wingnn_forward.1} parent=1 // pred_fallthru
      _
    // Predicated region
    $region6: #{wingnn_forward.1} parent=1 // pred_check
      _
    $region7: #{wingnn_forward.1} parent=1 // pred_check_branch
      %19 = sbr.rel (0) target = $region9
    $region8: #{wingnn_forward.1} parent=1 // pred_region
      _
    $region9: #{wingnn_forward.1} parent=1 // pred_fallthru
      _
    // Predicated region
    $region10: #{wingnn_forward.1} parent=1 // pred_check
      _
    $region11: #{wingnn_forward.1} parent=1 // pred_check_branch
      %21 = sbr.rel (0) target = $region13
    $region12: #{wingnn_forward.1} parent=1 // pred_region
      _
    $region13: #{wingnn_forward.1} parent=1 // pred_fallthru
      _
    // Predicated region
    $region14: #{wingnn_forward.1} parent=1 // pred_check
      _
    $region15: #{wingnn_forward.1} parent=1 // pred_check_branch
      %23 = sbr.rel (0) target = $region17
    $region16: #{wingnn_forward.1} parent=1 // pred_region
      _
    $region17: #{wingnn_forward.1} parent=1 // pred_fallthru
      _
    // Predicated region
    $region18: #{wingnn_forward.1} parent=1 // pred_check
      _
    $region19: #{wingnn_forward.1} parent=1 // pred_check_branch
      %25 = sbr.rel (0) target = $region21
    $region20: #{wingnn_forward.1} parent=1 // pred_region
      _
    $region21: #{wingnn_forward.1} parent=1 // pred_fallthru
      _
    // Predicated region
    $region22: #{wingnn_forward.1} parent=1 // pred_check
      _
    $region23: #{wingnn_forward.1} parent=1 // pred_check_branch
      %27 = sbr.rel (0) target = $region25
    $region24: #{wingnn_forward.1} parent=1 // pred_region
      _
    $region25: #{wingnn_forward.1} parent=1 // pred_fallthru
      _
    // Predicated region
    $region26: #{wingnn_forward.1} parent=1 // pred_check
      _
    $region27: #{wingnn_forward.1} parent=1 // pred_check_branch
      %29 = sbr.rel (0) target = $region29
    $region28: #{wingnn_forward.1} parent=1 // pred_region
      _
    $region29: #{wingnn_forward.1} parent=1 // pred_fallthru
      _
    // Predicated region
    $region30: #{wingnn_forward.1} parent=1 // pred_check
      _
    $region31: #{wingnn_forward.1} parent=1 // pred_check_branch
      %31 = sbr.rel (0) target = $region33
    $region32: #{wingnn_forward.1} parent=1 // pred_region
      _
    $region33: #{wingnn_forward.1} parent=1 // pred_fallthru
      _
    %v33 = vld [vmem:[%s0] sm:$0xf]
    %v34 = vld [vmem:[%s0 + $0x4] sm:$0xf]
    %v35 = vld [vmem:[%s0 + $0x8] sm:$0xf]
    %v36 = vld [vmem:[%s0 + $0xc] sm:$0xf]
    %v37 = vld [vmem:[%s0 + $0x10] sm:$0xf]
    %v38 = vld [vmem:[%s0 + $0x14] sm:$0xf]
    %v39 = vld [vmem:[%s0 + $0x18] sm:$0xf]
    %v40 = vld [vmem:[%s0 + $0x1c] sm:$0xf]
    %v41 = vld [vmem:[%s0 + $0x20] sm:$0xf]
    %v42 = vld [vmem:[%s0 + $0x24] sm:$0xf]
    %v43 = vld [vmem:[%s0 + $0x28] sm:$0xf]
    %v44 = vld [vmem:[%s0 + $0x2c] sm:$0xf]
    %v45 = vld [vmem:[%s0 + $0x30] sm:$0xf]
    %v46 = vld [vmem:[%s0 + $0x34] sm:$0xf]
    %v47 = vld [vmem:[%s0 + $0x38] sm:$0xf]
    %v48 = vld [vmem:[%s0 + $0x3c] sm:$0xf]
    %v49 = vld [vmem:[%s1] sm:$0xff]
    %v50 = vld [vmem:[%s1 + $0x8] sm:$0xff]
    %v51 = vld [vmem:[%s1 + $0x10] sm:$0xff]
    %v52 = vld [vmem:[%s1 + $0x18] sm:$0xff]
    %v53 = vld [vmem:[%s1 + $0x20] sm:$0xff]
    %v54 = vld [vmem:[%s1 + $0x28] sm:$0xff]
    %v55 = vld [vmem:[%s1 + $0x30] sm:$0xff]
    %v56 = vld [vmem:[%s1 + $0x38] sm:$0xff]
    %v57 = vld [vmem:[%s1 + $0x40] sm:$0xff]
    %v58 = vld [vmem:[%s1 + $0x48] sm:$0xff]
    %v59 = vld [vmem:[%s1 + $0x50] sm:$0xff]
    %v60 = vld [vmem:[%s1 + $0x58] sm:$0xff]
    %v61 = vld [vmem:[%s1 + $0x60] sm:$0xff]
    %v62 = vld [vmem:[%s1 + $0x68] sm:$0xff]
    %v63 = vld [vmem:[%s1 + $0x70] sm:$0xff]
    %v64 = vld [vmem:[%s1 + $0x78] sm:$0xff]
    %v65 = vpack.c.bf16 %v50, %v49
    %v66 = vpack.c.bf16 %v52, %v51
    %v67 = vpack.c.bf16 %v54, %v53
    %v68 = vpack.c.bf16 %v56, %v55
    %v69 = vpack.c.bf16 %v58, %v57
    %v70 = vpack.c.bf16 %v60, %v59
    %v71 = vpack.c.bf16 %v62, %v61
    %v72 = vpack.c.bf16 %v64, %v63
    %v89 = vunpack.c.l.b16 %v33
    %v90 = vunpack.c.l.b16 %v34
    %v91 = vunpack.c.l.b16 %v35
    %v92 = vunpack.c.l.b16 %v36
    %v93 = vunpack.c.l.b16 %v37
    %v94 = vunpack.c.l.b16 %v38
    %v95 = vunpack.c.l.b16 %v39
    %v96 = vunpack.c.l.b16 %v40
    %v97 = vunpack.c.l.b16 %v41
    %v98 = vunpack.c.l.b16 %v42
    %v99 = vunpack.c.l.b16 %v43
    %v100 = vunpack.c.l.b16 %v44
    %v101 = vunpack.c.l.b16 %v45
    %v102 = vunpack.c.l.b16 %v46
    %v103 = vunpack.c.l.b16 %v47
    %v104 = vunpack.c.l.b16 %v48
    %v105 = vpack.c.b16 %v90, %v89
    %v106 = vpack.c.b16 %v92, %v91
    %v107 = vpack.c.b16 %v94, %v93
    %v108 = vpack.c.b16 %v96, %v95
    %v109 = vpack.c.b16 %v98, %v97
    %v110 = vpack.c.b16 %v100, %v99
    %v111 = vpack.c.b16 %v102, %v101
    %v112 = vpack.c.b16 %v104, %v103
    %121 = vmatprep.subr.bf16.mxu0 0
    %122 = vmatpush1.bf16.msra.mxu0 %v65
    %123 = vmatprep.subr.bf16.mxu0 0
    %124 = vmatpush1.bf16.msra.mxu0 %v66
    %125 = vmatprep.subr.bf16.mxu0 0
    %126 = vmatpush1.bf16.msra.mxu0 %v67
    %127 = vmatprep.subr.bf16.mxu0 0
    %128 = vmatpush1.bf16.msra.mxu0 %v68
    %129 = vmatprep.subr.bf16.mxu0 0
    %130 = vmatpush1.bf16.msra.mxu0 %v69
    %131 = vmatprep.subr.bf16.mxu0 0
    %132 = vmatpush1.bf16.msra.mxu0 %v70
    %133 = vmatprep.subr.bf16.mxu0 0
    %134 = vmatpush1.bf16.msra.mxu0 %v71
    %135 = vmatprep.subr.bf16.mxu0 0
    %136 = vmatpush1.bf16.msra.mxu0 %v72
    %137 = vmatprep.subr.bf16.mxu0 0
    %138 = vmatpush1.bf16.msra.mxu0 0
    %139 = vmatprep.subr.bf16.mxu0 0
    %140 = vmatpush1.bf16.msra.mxu0 0
    %141 = vmatprep.subr.bf16.mxu0 0
    %142 = vmatpush1.bf16.msra.mxu0 0
    %143 = vmatprep.subr.bf16.mxu0 0
    %144 = vmatpush1.bf16.msra.mxu0 0
    %145 = vmatprep.subr.bf16.mxu0 0
    %146 = vmatpush1.bf16.msra.mxu0 0
    %147 = vmatprep.subr.bf16.mxu0 0
    %148 = vmatpush1.bf16.msra.mxu0 0
    %149 = vmatprep.subr.bf16.mxu0 0
    %150 = vmatpush1.bf16.msra.mxu0 0
    %151 = vmatprep.subr.bf16.mxu0 0
    %152 = vmatpush1.bf16.msra.mxu0 0
    %153 = vmatprep.mubr.bf16.mxu0 0
    %154 = vmatmul.mubr.bf16.gmra.mrb[0].mxu0 %v105
    %v155 = vpop.f32.mrb[0].mxu0
    %v156 = vadd.f32 0.0, %v155
    %v157 = vpop.f32.mrb[0].mxu0
    %v158 = vpop.f32.mrb[0].mxu0
    %v159 = vadd.f32 0.0, %v158
    %v160 = vpop.f32.mrb[0].mxu0
    %161 = vmatprep.mubr.bf16.mxu0 0
    %162 = vmatmul.mubr.bf16.gmra.mrb[0].mxu0 %v106
    %v163 = vpop.f32.mrb[0].mxu0
    %v164 = vadd.f32 0.0, %v163
    %v165 = vpop.f32.mrb[0].mxu0
    %v166 = vpop.f32.mrb[0].mxu0
    %v167 = vadd.f32 0.0, %v166
    %v168 = vpop.f32.mrb[0].mxu0
    %169 = vmatprep.mubr.bf16.mxu0 0
    %170 = vmatmul.mubr.bf16.gmra.mrb[0].mxu0 %v107
    %v171 = vpop.f32.mrb[0].mxu0
    %v172 = vadd.f32 0.0, %v171
    %v173 = vpop.f32.mrb[0].mxu0
    %v174 = vpop.f32.mrb[0].mxu0
    %v175 = vadd.f32 0.0, %v174
    %v176 = vpop.f32.mrb[0].mxu0
    %177 = vmatprep.mubr.bf16.mxu0 0
    %178 = vmatmul.mubr.bf16.gmra.mrb[0].mxu0 %v108
    %v179 = vpop.f32.mrb[0].mxu0
    %v180 = vadd.f32 0.0, %v179
    %v181 = vpop.f32.mrb[0].mxu0
    %v182 = vpop.f32.mrb[0].mxu0
    %v183 = vadd.f32 0.0, %v182
    %v184 = vpop.f32.mrb[0].mxu0
    %185 = vmatprep.mubr.bf16.mxu0 0
    %186 = vmatmul.mubr.bf16.gmra.mrb[0].mxu0 %v109
    %v187 = vpop.f32.mrb[0].mxu0
    %v188 = vadd.f32 0.0, %v187
    %v189 = vpop.f32.mrb[0].mxu0
    %v190 = vpop.f32.mrb[0].mxu0
    %v191 = vadd.f32 0.0, %v190
    %v192 = vpop.f32.mrb[0].mxu0
    %193 = vmatprep.mubr.bf16.mxu0 0
    %194 = vmatmul.mubr.bf16.gmra.mrb[0].mxu0 %v110
    %v195 = vpop.f32.mrb[0].mxu0
    %v196 = vadd.f32 0.0, %v195
    %v197 = vpop.f32.mrb[0].mxu0
    %v198 = vpop.f32.mrb[0].mxu0
    %v199 = vadd.f32 0.0, %v198
    %v200 = vpop.f32.mrb[0].mxu0
    %201 = vmatprep.mubr.bf16.mxu0 0
    %202 = vmatmul.mubr.bf16.gmra.mrb[0].mxu0 %v111
    %v203 = vpop.f32.mrb[0].mxu0
    %v204 = vadd.f32 0.0, %v203
    %v205 = vpop.f32.mrb[0].mxu0
    %v206 = vpop.f32.mrb[0].mxu0
    %v207 = vadd.f32 0.0, %v206
    %v208 = vpop.f32.mrb[0].mxu0
    %209 = vmatprep.mubr.bf16.mxu0 0
    %210 = vmatmul.mubr.bf16.gmra.mrb[0].mxu0 %v112
    %v211 = vpop.f32.mrb[0].mxu0
    %v212 = vadd.f32 0.0, %v211
    %v213 = vpop.f32.mrb[0].mxu0
    %v214 = vpop.f32.mrb[0].mxu0
    %v215 = vadd.f32 0.0, %v214
    %v216 = vpop.f32.mrb[0].mxu0
    %217 = vdwg.mxu0
    %234 = vrot.lane.b32.xlu0 %v49, 64
    %v235 = vpop.permute.xlu0 %234
    %236 = vrot.lane.b32.xlu0 %v50, 64
    %v237 = vpop.permute.xlu0 %236
    %238 = vrot.lane.b32.xlu0 %v51, 64
    %v239 = vpop.permute.xlu0 %238
    %240 = vrot.lane.b32.xlu0 %v52, 64
    %v241 = vpop.permute.xlu0 %240
    %242 = vrot.lane.b32.xlu0 %v53, 64
    %v243 = vpop.permute.xlu0 %242
    %244 = vrot.lane.b32.xlu0 %v54, 64
    %v245 = vpop.permute.xlu0 %244
    %246 = vrot.lane.b32.xlu0 %v55, 64
    %v247 = vpop.permute.xlu0 %246
    %248 = vrot.lane.b32.xlu0 %v56, 64
    %v249 = vpop.permute.xlu0 %248
    %250 = vrot.lane.b32.xlu0 %v57, 64
    %v251 = vpop.permute.xlu0 %250
    %252 = vrot.lane.b32.xlu0 %v58, 64
    %v253 = vpop.permute.xlu0 %252
    %254 = vrot.lane.b32.xlu0 %v59, 64
    %v255 = vpop.permute.xlu0 %254
    %256 = vrot.lane.b32.xlu0 %v60, 64
    %v257 = vpop.permute.xlu0 %256
    %258 = vrot.lane.b32.xlu0 %v61, 64
    %v259 = vpop.permute.xlu0 %258
    %260 = vrot.lane.b32.xlu0 %v62, 64
    %v261 = vpop.permute.xlu0 %260
    %262 = vrot.lane.b32.xlu0 %v63, 64
    %v263 = vpop.permute.xlu0 %262
    %264 = vrot.lane.b32.xlu0 %v64, 64
    %v265 = vpop.permute.xlu0 %264
    %vm282 = vcmask 523264
    %v283 = vsel %vm282, %v156, %v235
    %v284 = vsel %vm282, %v159, %v237
    %v285 = vsel %vm282, %v164, %v239
    %v286 = vsel %vm282, %v167, %v241
    %v287 = vsel %vm282, %v172, %v243
    %v288 = vsel %vm282, %v175, %v245
    %v289 = vsel %vm282, %v180, %v247
    %v290 = vsel %vm282, %v183, %v249
    %v291 = vsel %vm282, %v188, %v251
    %v292 = vsel %vm282, %v191, %v253
    %v293 = vsel %vm282, %v196, %v255
    %v294 = vsel %vm282, %v199, %v257
    %v295 = vsel %vm282, %v204, %v259
    %v296 = vsel %vm282, %v207, %v261
    %v297 = vsel %vm282, %v212, %v263
    %v298 = vsel %vm282, %v215, %v265
    %v299 = vpack.c.bf16 %v284, %v283
    %v300 = vpack.c.bf16 %v286, %v285
    %v301 = vpack.c.bf16 %v288, %v287
    %v302 = vpack.c.bf16 %v290, %v289
    %v303 = vpack.c.bf16 %v292, %v291
    %v304 = vpack.c.bf16 %v294, %v293
    %v305 = vpack.c.bf16 %v296, %v295
    %v306 = vpack.c.bf16 %v298, %v297
    %v307 = vld [vmem:[%s2] sm:$0xf]
    %v308 = vld [vmem:[%s2 + $0x4] sm:$0xf]
    %v309 = vld [vmem:[%s2 + $0x8] sm:$0xf]
    %v310 = vld [vmem:[%s2 + $0xc] sm:$0xf]
    %v311 = vld [vmem:[%s2 + $0x10] sm:$0xf]
    %v312 = vld [vmem:[%s2 + $0x14] sm:$0xf]
    %v313 = vld [vmem:[%s2 + $0x18] sm:$0xf]
    %v314 = vld [vmem:[%s2 + $0x1c] sm:$0xf]
    %v315 = vld [vmem:[%s2 + $0x20] sm:$0xf]
    %v316 = vld [vmem:[%s2 + $0x24] sm:$0xf]
    %v317 = vld [vmem:[%s2 + $0x28] sm:$0xf]
    %v318 = vld [vmem:[%s2 + $0x2c] sm:$0xf]
    %v319 = vld [vmem:[%s2 + $0x30] sm:$0xf]
    %v320 = vld [vmem:[%s2 + $0x34] sm:$0xf]
    %v321 = vld [vmem:[%s2 + $0x38] sm:$0xf]
    %v322 = vld [vmem:[%s2 + $0x3c] sm:$0xf]
    %v323 = vld [vmem:[%s3] sm:$0x1]
    %v325 = vlaneseq
    %v326 = vshrl.u32 %v325, 7
    %v327 = vsub.s32 0, %v326
    %v328 = vrot.slane %v323, %v327
    %v346 = vunpack.c.l.b16 %v307
    %v347 = vunpack.c.l.b16 %v308
    %v348 = vunpack.c.l.b16 %v309
    %v349 = vunpack.c.l.b16 %v310
    %v350 = vunpack.c.l.b16 %v311
    %v351 = vunpack.c.l.b16 %v312
    %v352 = vunpack.c.l.b16 %v313
    %v353 = vunpack.c.l.b16 %v314
    %v354 = vunpack.c.l.b16 %v315
    %v355 = vunpack.c.l.b16 %v316
    %v356 = vunpack.c.l.b16 %v317
    %v357 = vunpack.c.l.b16 %v318
    %v358 = vunpack.c.l.b16 %v319
    %v359 = vunpack.c.l.b16 %v320
    %v360 = vunpack.c.l.b16 %v321
    %v361 = vunpack.c.l.b16 %v322
    %v362 = vpack.c.b16 %v347, %v346
    %v363 = vpack.c.b16 %v349, %v348
    %v364 = vpack.c.b16 %v351, %v350
    %v365 = vpack.c.b16 %v353, %v352
    %v366 = vpack.c.b16 %v355, %v354
    %v367 = vpack.c.b16 %v357, %v356
    %v368 = vpack.c.b16 %v359, %v358
    %v369 = vpack.c.b16 %v361, %v360
    %378 = vmatprep.subr.bf16.mxu0 0
    %379 = vmatpush1.bf16.msra.mxu0 %v362
    %380 = vmatprep.subr.bf16.mxu0 0
    %381 = vmatpush1.bf16.msra.mxu0 %v363
    %382 = vmatprep.subr.bf16.mxu0 0
    %383 = vmatpush1.bf16.msra.mxu0 %v364
    %384 = vmatprep.subr.bf16.mxu0 0
    %385 = vmatpush1.bf16.msra.mxu0 %v365
    %386 = vmatprep.subr.bf16.mxu0 0
    %387 = vmatpush1.bf16.msra.mxu0 %v366
    %388 = vmatprep.subr.bf16.mxu0 0
    %389 = vmatpush1.bf16.msra.mxu0 %v367
    %390 = vmatprep.subr.bf16.mxu0 0
    %391 = vmatpush1.bf16.msra.mxu0 %v368
    %392 = vmatprep.subr.bf16.mxu0 0
    %393 = vmatpush1.bf16.msra.mxu0 %v369
    %394 = vmatprep.subr.bf16.mxu0 0
    %395 = vmatpush1.bf16.msra.mxu0 0
    %396 = vmatprep.subr.bf16.mxu0 0
    %397 = vmatpush1.bf16.msra.mxu0 0
    %398 = vmatprep.subr.bf16.mxu0 0
    %399 = vmatpush1.bf16.msra.mxu0 0
    %400 = vmatprep.subr.bf16.mxu0 0
    %401 = vmatpush1.bf16.msra.mxu0 0
    %402 = vmatprep.subr.bf16.mxu0 0
    %403 = vmatpush1.bf16.msra.mxu0 0
    %404 = vmatprep.subr.bf16.mxu0 0
    %405 = vmatpush1.bf16.msra.mxu0 0
    %406 = vmatprep.subr.bf16.mxu0 0
    %407 = vmatpush1.bf16.msra.mxu0 0
    %408 = vmatprep.subr.bf16.mxu0 0
    %409 = vmatpush1.bf16.msra.mxu0 0
    %410 = vmatprep.mubr.bf16.mxu0 0
    %411 = vmatmul.mubr.bf16.gmra.mrb[0].mxu0 %v299
    %v412 = vpop.f32.mrb[0].mxu0
    %v413 = vadd.f32 %v328, %v412
    %v414 = vpop.f32.mrb[0].mxu0
    %v415 = vpop.f32.mrb[0].mxu0
    %v416 = vadd.f32 %v328, %v415
    %v417 = vpop.f32.mrb[0].mxu0
    %418 = vmatprep.mubr.bf16.mxu0 0
    %419 = vmatmul.mubr.bf16.gmra.mrb[0].mxu0 %v300
    %v420 = vpop.f32.mrb[0].mxu0
    %v421 = vadd.f32 %v328, %v420
    %v422 = vpop.f32.mrb[0].mxu0
    %v423 = vpop.f32.mrb[0].mxu0
    %v424 = vadd.f32 %v328, %v423
    %v425 = vpop.f32.mrb[0].mxu0
    %426 = vmatprep.mubr.bf16.mxu0 0
    %427 = vmatmul.mubr.bf16.gmra.mrb[0].mxu0 %v301
    %v428 = vpop.f32.mrb[0].mxu0
    %v429 = vadd.f32 %v328, %v428
    %v430 = vpop.f32.mrb[0].mxu0
    %v431 = vpop.f32.mrb[0].mxu0
    %v432 = vadd.f32 %v328, %v431
    %v433 = vpop.f32.mrb[0].mxu0
    %434 = vmatprep.mubr.bf16.mxu0 0
    %435 = vmatmul.mubr.bf16.gmra.mrb[0].mxu0 %v302
    %v436 = vpop.f32.mrb[0].mxu0
    %v437 = vadd.f32 %v328, %v436
    %v438 = vpop.f32.mrb[0].mxu0
    %v439 = vpop.f32.mrb[0].mxu0
    %v440 = vadd.f32 %v328, %v439
    %v441 = vpop.f32.mrb[0].mxu0
    %442 = vmatprep.mubr.bf16.mxu0 0
    %443 = vmatmul.mubr.bf16.gmra.mrb[0].mxu0 %v303
    %v444 = vpop.f32.mrb[0].mxu0
    %v445 = vadd.f32 %v328, %v444
    %v446 = vpop.f32.mrb[0].mxu0
    %v447 = vpop.f32.mrb[0].mxu0
    %v448 = vadd.f32 %v328, %v447
    %v449 = vpop.f32.mrb[0].mxu0
    %450 = vmatprep.mubr.bf16.mxu0 0
    %451 = vmatmul.mubr.bf16.gmra.mrb[0].mxu0 %v304
    %v452 = vpop.f32.mrb[0].mxu0
    %v453 = vadd.f32 %v328, %v452
    %v454 = vpop.f32.mrb[0].mxu0
    %v455 = vpop.f32.mrb[0].mxu0
    %v456 = vadd.f32 %v328, %v455
    %v457 = vpop.f32.mrb[0].mxu0
    %458 = vmatprep.mubr.bf16.mxu0 0
    %459 = vmatmul.mubr.bf16.gmra.mrb[0].mxu0 %v305
    %v460 = vpop.f32.mrb[0].mxu0
    %v461 = vadd.f32 %v328, %v460
    %v462 = vpop.f32.mrb[0].mxu0
    %v463 = vpop.f32.mrb[0].mxu0
    %v464 = vadd.f32 %v328, %v463
    %v465 = vpop.f32.mrb[0].mxu0
    %466 = vmatprep.mubr.bf16.mxu0 0
    %467 = vmatmul.mubr.bf16.gmra.mrb[0].mxu0 %v306
    %v468 = vpop.f32.mrb[0].mxu0
    %v469 = vadd.f32 %v328, %v468
    %v470 = vpop.f32.mrb[0].mxu0
    %v471 = vpop.f32.mrb[0].mxu0
    %v472 = vadd.f32 %v328, %v471
    %v473 = vpop.f32.mrb[0].mxu0
    %474 = vdwg.mxu0
    %v475 = vpack.c.bf16 %v416, %v413
    %v476 = vpack.c.bf16 %v424, %v421
    %v477 = vpack.c.bf16 %v432, %v429
    %v478 = vpack.c.bf16 %v440, %v437
    %v479 = vpack.c.bf16 %v448, %v445
    %v480 = vpack.c.bf16 %v456, %v453
    %v481 = vpack.c.bf16 %v464, %v461
    %v482 = vpack.c.bf16 %v472, %v469
    %483 = vmatprep.subr.bf16.mxu0 0
    %484 = vmatpush1.bf16.msra.mxu0 %v475
    %485 = vmatprep.subr.bf16.mxu0 0
    %486 = vmatpush1.bf16.msra.mxu0 %v476
    %487 = vmatprep.subr.bf16.mxu0 0
    %488 = vmatpush1.bf16.msra.mxu0 %v477
    %489 = vmatprep.subr.bf16.mxu0 0
    %490 = vmatpush1.bf16.msra.mxu0 %v478
    %491 = vmatprep.subr.bf16.mxu0 0
    %492 = vmatpush1.bf16.msra.mxu0 %v479
    %493 = vmatprep.subr.bf16.mxu0 0
    %494 = vmatpush1.bf16.msra.mxu0 %v480
    %495 = vmatprep.subr.bf16.mxu0 0
    %496 = vmatpush1.bf16.msra.mxu0 %v481
    %497 = vmatprep.subr.bf16.mxu0 0
    %498 = vmatpush1.bf16.msra.mxu0 %v482
    %499 = vmatprep.subr.bf16.mxu0 0
    %500 = vmatpush1.bf16.msra.mxu0 0
    %501 = vmatprep.subr.bf16.mxu0 0
    %502 = vmatpush1.bf16.msra.mxu0 0
    %503 = vmatprep.subr.bf16.mxu0 0
    %504 = vmatpush1.bf16.msra.mxu0 0
    %505 = vmatprep.subr.bf16.mxu0 0
    %506 = vmatpush1.bf16.msra.mxu0 0
    %507 = vmatprep.subr.bf16.mxu0 0
    %508 = vmatpush1.bf16.msra.mxu0 0
    %509 = vmatprep.subr.bf16.mxu0 0
    %510 = vmatpush1.bf16.msra.mxu0 0
    %511 = vmatprep.subr.bf16.mxu0 0
    %512 = vmatpush1.bf16.msra.mxu0 0
    %513 = vmatprep.subr.bf16.mxu0 0
    %514 = vmatpush1.bf16.msra.mxu0 0
    %515 = vmatprep.mubr.bf16.mxu0 0
    %516 = vmatmul.mubr.bf16.gmra.mrb[0].mxu0 %v105
    %v517 = vpop.f32.mrb[0].mxu0
    %v518 = vadd.f32 0.0, %v517
    %v519 = vpop.f32.mrb[0].mxu0
    %v520 = vpop.f32.mrb[0].mxu0
    %v521 = vadd.f32 0.0, %v520
    %v522 = vpop.f32.mrb[0].mxu0
    %523 = vmatprep.mubr.bf16.mxu0 0
    %524 = vmatmul.mubr.bf16.gmra.mrb[0].mxu0 %v106
    %v525 = vpop.f32.mrb[0].mxu0
    %v526 = vadd.f32 0.0, %v525
    %v527 = vpop.f32.mrb[0].mxu0
    %v528 = vpop.f32.mrb[0].mxu0
    %v529 = vadd.f32 0.0, %v528
    %v530 = vpop.f32.mrb[0].mxu0
    %531 = vmatprep.mubr.bf16.mxu0 0
    %532 = vmatmul.mubr.bf16.gmra.mrb[0].mxu0 %v107
    %v533 = vpop.f32.mrb[0].mxu0
    %v534 = vadd.f32 0.0, %v533
    %v535 = vpop.f32.mrb[0].mxu0
    %v536 = vpop.f32.mrb[0].mxu0
    %v537 = vadd.f32 0.0, %v536
    %v538 = vpop.f32.mrb[0].mxu0
    %539 = vmatprep.mubr.bf16.mxu0 0
    %540 = vmatmul.mubr.bf16.gmra.mrb[0].mxu0 %v108
    %v541 = vpop.f32.mrb[0].mxu0
    %v542 = vadd.f32 0.0, %v541
    %v543 = vpop.f32.mrb[0].mxu0
    %v544 = vpop.f32.mrb[0].mxu0
    %v545 = vadd.f32 0.0, %v544
    %v546 = vpop.f32.mrb[0].mxu0
    %547 = vmatprep.mubr.bf16.mxu0 0
    %548 = vmatmul.mubr.bf16.gmra.mrb[0].mxu0 %v109
    %v549 = vpop.f32.mrb[0].mxu0
    %v550 = vadd.f32 0.0, %v549
    %v551 = vpop.f32.mrb[0].mxu0
    %v552 = vpop.f32.mrb[0].mxu0
    %v553 = vadd.f32 0.0, %v552
    %v554 = vpop.f32.mrb[0].mxu0
    %555 = vmatprep.mubr.bf16.mxu0 0
    %556 = vmatmul.mubr.bf16.gmra.mrb[0].mxu0 %v110
    %v557 = vpop.f32.mrb[0].mxu0
    %v558 = vadd.f32 0.0, %v557
    %v559 = vpop.f32.mrb[0].mxu0
    %v560 = vpop.f32.mrb[0].mxu0
    %v561 = vadd.f32 0.0, %v560
    %v562 = vpop.f32.mrb[0].mxu0
    %563 = vmatprep.mubr.bf16.mxu0 0
    %564 = vmatmul.mubr.bf16.gmra.mrb[0].mxu0 %v111
    %v565 = vpop.f32.mrb[0].mxu0
    %v566 = vadd.f32 0.0, %v565
    %v567 = vpop.f32.mrb[0].mxu0
    %v568 = vpop.f32.mrb[0].mxu0
    %v569 = vadd.f32 0.0, %v568
    %v570 = vpop.f32.mrb[0].mxu0
    %571 = vmatprep.mubr.bf16.mxu0 0
    %572 = vmatmul.mubr.bf16.gmra.mrb[0].mxu0 %v112
    %v573 = vpop.f32.mrb[0].mxu0
    %v574 = vadd.f32 0.0, %v573
    %v575 = vpop.f32.mrb[0].mxu0
    %v576 = vpop.f32.mrb[0].mxu0
    %v577 = vadd.f32 0.0, %v576
    %v578 = vpop.f32.mrb[0].mxu0
    %579 = vdwg.mxu0
    %v580 = vpack.c.bf16 %v521, %v518
    %v581 = vpack.c.bf16 %v529, %v526
    %v582 = vpack.c.bf16 %v537, %v534
    %v583 = vpack.c.bf16 %v545, %v542
    %v584 = vpack.c.bf16 %v553, %v550
    %v585 = vpack.c.bf16 %v561, %v558
    %v586 = vpack.c.bf16 %v569, %v566
    %v587 = vpack.c.bf16 %v577, %v574
    %v588 = vld [vmem:[%s4] sm:$0xf]
    %v589 = vld [vmem:[%s4 + $0x4] sm:$0xf]
    %v590 = vld [vmem:[%s4 + $0x8] sm:$0xf]
    %v591 = vld [vmem:[%s4 + $0xc] sm:$0xf]
    %v592 = vld [vmem:[%s4 + $0x10] sm:$0xf]
    %v593 = vld [vmem:[%s4 + $0x14] sm:$0xf]
    %v594 = vld [vmem:[%s4 + $0x18] sm:$0xf]
    %v595 = vld [vmem:[%s4 + $0x1c] sm:$0xf]
    %v596 = vld [vmem:[%s4 + $0x20] sm:$0xf]
    %v597 = vld [vmem:[%s4 + $0x24] sm:$0xf]
    %v598 = vld [vmem:[%s4 + $0x28] sm:$0xf]
    %v599 = vld [vmem:[%s4 + $0x2c] sm:$0xf]
    %v600 = vld [vmem:[%s4 + $0x30] sm:$0xf]
    %v601 = vld [vmem:[%s4 + $0x34] sm:$0xf]
    %v602 = vld [vmem:[%s4 + $0x38] sm:$0xf]
    %v603 = vld [vmem:[%s4 + $0x3c] sm:$0xf]
    %v604 = vld [vmem:[%s4 + $0x40] sm:$0xf]
    %v605 = vld [vmem:[%s4 + $0x44] sm:$0xf]
    %v606 = vld [vmem:[%s4 + $0x48] sm:$0xf]
    %v607 = vld [vmem:[%s4 + $0x4c] sm:$0xf]
    %v608 = vld [vmem:[%s4 + $0x50] sm:$0xf]
    %v609 = vld [vmem:[%s4 + $0x54] sm:$0xf]
    %v610 = vld [vmem:[%s4 + $0x58] sm:$0xf]
    %v611 = vld [vmem:[%s4 + $0x5c] sm:$0xf]
    %v612 = vld [vmem:[%s4 + $0x60] sm:$0xf]
    %v613 = vld [vmem:[%s4 + $0x64] sm:$0xf]
    %v614 = vld [vmem:[%s4 + $0x68] sm:$0xf]
    %v615 = vld [vmem:[%s4 + $0x6c] sm:$0xf]
    %v616 = vld [vmem:[%s4 + $0x70] sm:$0xf]
    %v617 = vld [vmem:[%s4 + $0x74] sm:$0xf]
    %v618 = vld [vmem:[%s4 + $0x78] sm:$0xf]
    %v619 = vld [vmem:[%s4 + $0x7c] sm:$0xf]
    %v620 = vld [vmem:[%s5] sm:$0x1]
    %v622 = vlaneseq
    %v623 = vshrl.u32 %v622, 7
    %v624 = vsub.s32 0, %v623
    %v625 = vrot.slane %v620, %v624
    %v659 = vunpack.c.l.b16 %v588
    %v660 = vunpack.c.l.b16 %v589
    %v661 = vunpack.c.l.b16 %v590
    %v662 = vunpack.c.l.b16 %v591
    %v663 = vunpack.c.l.b16 %v592
    %v664 = vunpack.c.l.b16 %v593
    %v665 = vunpack.c.l.b16 %v594
    %v666 = vunpack.c.l.b16 %v595
    %v667 = vunpack.c.l.b16 %v596
    %v668 = vunpack.c.l.b16 %v597
    %v669 = vunpack.c.l.b16 %v598
    %v670 = vunpack.c.l.b16 %v599
    %v671 = vunpack.c.l.b16 %v600
    %v672 = vunpack.c.l.b16 %v601
    %v673 = vunpack.c.l.b16 %v602
    %v674 = vunpack.c.l.b16 %v603
    %v675 = vunpack.c.l.b16 %v604
    %v676 = vunpack.c.l.b16 %v605
    %v677 = vunpack.c.l.b16 %v606
    %v678 = vunpack.c.l.b16 %v607
    %v679 = vunpack.c.l.b16 %v608
    %v680 = vunpack.c.l.b16 %v609
    %v681 = vunpack.c.l.b16 %v610
    %v682 = vunpack.c.l.b16 %v611
    %v683 = vunpack.c.l.b16 %v612
    %v684 = vunpack.c.l.b16 %v613
    %v685 = vunpack.c.l.b16 %v614
    %v686 = vunpack.c.l.b16 %v615
    %v687 = vunpack.c.l.b16 %v616
    %v688 = vunpack.c.l.b16 %v617
    %v689 = vunpack.c.l.b16 %v618
    %v690 = vunpack.c.l.b16 %v619
    %v691 = vpack.c.b16 %v660, %v659
    %v692 = vpack.c.b16 %v662, %v661
    %v693 = vpack.c.b16 %v664, %v663
    %v694 = vpack.c.b16 %v666, %v665
    %v695 = vpack.c.b16 %v668, %v667
    %v696 = vpack.c.b16 %v670, %v669
    %v697 = vpack.c.b16 %v672, %v671
    %v698 = vpack.c.b16 %v674, %v673
    %v699 = vpack.c.b16 %v676, %v675
    %v700 = vpack.c.b16 %v678, %v677
    %v701 = vpack.c.b16 %v680, %v679
    %v702 = vpack.c.b16 %v682, %v681
    %v703 = vpack.c.b16 %v684, %v683
    %v704 = vpack.c.b16 %v686, %v685
    %v705 = vpack.c.b16 %v688, %v687
    %v706 = vpack.c.b16 %v690, %v689
    %723 = vmatprep.subr.bf16.mxu0 0
    %724 = vmatpush1.bf16.msra.mxu0 %v691
    %725 = vmatprep.subr.bf16.mxu0 0
    %726 = vmatpush1.bf16.msra.mxu0 %v692
    %727 = vmatprep.subr.bf16.mxu0 0
    %728 = vmatpush1.bf16.msra.mxu0 %v693
    %729 = vmatprep.subr.bf16.mxu0 0
    %730 = vmatpush1.bf16.msra.mxu0 %v694
    %731 = vmatprep.subr.bf16.mxu0 0
    %732 = vmatpush1.bf16.msra.mxu0 %v695
    %733 = vmatprep.subr.bf16.mxu0 0
    %734 = vmatpush1.bf16.msra.mxu0 %v696
    %735 = vmatprep.subr.bf16.mxu0 0
    %736 = vmatpush1.bf16.msra.mxu0 %v697
    %737 = vmatprep.subr.bf16.mxu0 0
    %738 = vmatpush1.bf16.msra.mxu0 %v698
    %739 = vmatprep.subr.bf16.mxu0 0
    %740 = vmatpush1.bf16.msra.mxu0 %v699
    %741 = vmatprep.subr.bf16.mxu0 0
    %742 = vmatpush1.bf16.msra.mxu0 %v700
    %743 = vmatprep.subr.bf16.mxu0 0
    %744 = vmatpush1.bf16.msra.mxu0 %v701
    %745 = vmatprep.subr.bf16.mxu0 0
    %746 = vmatpush1.bf16.msra.mxu0 %v702
    %747 = vmatprep.subr.bf16.mxu0 0
    %748 = vmatpush1.bf16.msra.mxu0 %v703
    %749 = vmatprep.subr.bf16.mxu0 0
    %750 = vmatpush1.bf16.msra.mxu0 %v704
    %751 = vmatprep.subr.bf16.mxu0 0
    %752 = vmatpush1.bf16.msra.mxu0 %v705
    %753 = vmatprep.subr.bf16.mxu0 0
    %754 = vmatpush1.bf16.msra.mxu0 %v706
    %755 = vmatprep.mubr.bf16.mxu0 %v475
    %756 = vmatmul.mubr.bf16.gmra.mrb[0].mxu0 %v580
    %v757 = vpop.f32.mrb[0].mxu0
    %v758 = vadd.f32 %v625, %v757
    %v759 = vpop.f32.mrb[0].mxu0
    %v760 = vpop.f32.mrb[0].mxu0
    %v761 = vadd.f32 %v625, %v760
    %v762 = vpop.f32.mrb[0].mxu0
    %763 = vmatprep.mubr.bf16.mxu0 %v476
    %764 = vmatmul.mubr.bf16.gmra.mrb[0].mxu0 %v581
    %v765 = vpop.f32.mrb[0].mxu0
    %v766 = vadd.f32 %v625, %v765
    %v767 = vpop.f32.mrb[0].mxu0
    %v768 = vpop.f32.mrb[0].mxu0
    %v769 = vadd.f32 %v625, %v768
    %v770 = vpop.f32.mrb[0].mxu0
    %771 = vmatprep.mubr.bf16.mxu0 %v477
    %772 = vmatmul.mubr.bf16.gmra.mrb[0].mxu0 %v582
    %v773 = vpop.f32.mrb[0].mxu0
    %v774 = vadd.f32 %v625, %v773
    %v775 = vpop.f32.mrb[0].mxu0
    %v776 = vpop.f32.mrb[0].mxu0
    %v777 = vadd.f32 %v625, %v776
    %v778 = vpop.f32.mrb[0].mxu0
    %779 = vmatprep.mubr.bf16.mxu0 %v478
    %780 = vmatmul.mubr.bf16.gmra.mrb[0].mxu0 %v583
    %v781 = vpop.f32.mrb[0].mxu0
    %v782 = vadd.f32 %v625, %v781
    %v783 = vpop.f32.mrb[0].mxu0
    %v784 = vpop.f32.mrb[0].mxu0
    %v785 = vadd.f32 %v625, %v784
    %v786 = vpop.f32.mrb[0].mxu0
    %787 = vmatprep.mubr.bf16.mxu0 %v479
    %788 = vmatmul.mubr.bf16.gmra.mrb[0].mxu0 %v584
    %v789 = vpop.f32.mrb[0].mxu0
    %v790 = vadd.f32 %v625, %v789
    %v791 = vpop.f32.mrb[0].mxu0
    %v792 = vpop.f32.mrb[0].mxu0
    %v793 = vadd.f32 %v625, %v792
    %v794 = vpop.f32.mrb[0].mxu0
    %795 = vmatprep.mubr.bf16.mxu0 %v480
    %796 = vmatmul.mubr.bf16.gmra.mrb[0].mxu0 %v585
    %v797 = vpop.f32.mrb[0].mxu0
    %v798 = vadd.f32 %v625, %v797
    %v799 = vpop.f32.mrb[0].mxu0
    %v800 = vpop.f32.mrb[0].mxu0
    %v801 = vadd.f32 %v625, %v800
    %v802 = vpop.f32.mrb[0].mxu0
    %803 = vmatprep.mubr.bf16.mxu0 %v481
    %804 = vmatmul.mubr.bf16.gmra.mrb[0].mxu0 %v586
    %v805 = vpop.f32.mrb[0].mxu0
    %v806 = vadd.f32 %v625, %v805
    %v807 = vpop.f32.mrb[0].mxu0
    %v808 = vpop.f32.mrb[0].mxu0
    %v809 = vadd.f32 %v625, %v808
    %v810 = vpop.f32.mrb[0].mxu0
    %811 = vmatprep.mubr.bf16.mxu0 %v482
    %812 = vmatmul.mubr.bf16.gmra.mrb[0].mxu0 %v587
    %v813 = vpop.f32.mrb[0].mxu0
    %v814 = vadd.f32 %v625, %v813
    %v815 = vpop.f32.mrb[0].mxu0
    %v816 = vpop.f32.mrb[0].mxu0
    %v817 = vadd.f32 %v625, %v816
    %v818 = vpop.f32.mrb[0].mxu0
    %819 = vdwg.mxu0
    %v820 = vmul.f32 %v758, %v758
    %v821 = vmul.f32 %v761, %v761
    %v822 = vmul.f32 %v766, %v766
    %v823 = vmul.f32 %v769, %v769
    %v824 = vmul.f32 %v774, %v774
    %v825 = vmul.f32 %v777, %v777
    %v826 = vmul.f32 %v782, %v782
    %v827 = vmul.f32 %v785, %v785
    %v828 = vmul.f32 %v790, %v790
    %v829 = vmul.f32 %v793, %v793
    %v830 = vmul.f32 %v798, %v798
    %v831 = vmul.f32 %v801, %v801
    %v832 = vmul.f32 %v806, %v806
    %v833 = vmul.f32 %v809, %v809
    %v834 = vmul.f32 %v814, %v814
    %v835 = vmul.f32 %v817, %v817
    %836 = vadd.xlane.f32.xlu0 %v820
    %v837 = vpop.xlane.xlu0 %836
    %838 = vadd.xlane.f32.xlu0 %v821
    %v839 = vpop.xlane.xlu0 %838
    %840 = vadd.xlane.f32.xlu0 %v822
    %v841 = vpop.xlane.xlu0 %840
    %842 = vadd.xlane.f32.xlu0 %v823
    %v843 = vpop.xlane.xlu0 %842
    %844 = vadd.xlane.f32.xlu0 %v824
    %v845 = vpop.xlane.xlu0 %844
    %846 = vadd.xlane.f32.xlu0 %v825
    %v847 = vpop.xlane.xlu0 %846
    %848 = vadd.xlane.f32.xlu0 %v826
    %v849 = vpop.xlane.xlu0 %848
    %850 = vadd.xlane.f32.xlu0 %v827
    %v851 = vpop.xlane.xlu0 %850
    %852 = vadd.xlane.f32.xlu0 %v828
    %v853 = vpop.xlane.xlu0 %852
    %854 = vadd.xlane.f32.xlu0 %v829
    %v855 = vpop.xlane.xlu0 %854
    %856 = vadd.xlane.f32.xlu0 %v830
    %v857 = vpop.xlane.xlu0 %856
    %858 = vadd.xlane.f32.xlu0 %v831
    %v859 = vpop.xlane.xlu0 %858
    %860 = vadd.xlane.f32.xlu0 %v832
    %v861 = vpop.xlane.xlu0 %860
    %862 = vadd.xlane.f32.xlu0 %v833
    %v863 = vpop.xlane.xlu0 %862
    %864 = vadd.xlane.f32.xlu0 %v834
    %v865 = vpop.xlane.xlu0 %864
    %866 = vadd.xlane.f32.xlu0 %v835
    %v867 = vpop.xlane.xlu0 %866
    %v868 = vmax.f32 %v837, 1e-24
    %v869 = vmax.f32 %v839, 1e-24
    %v870 = vmax.f32 %v841, 1e-24
    %v871 = vmax.f32 %v843, 1e-24
    %v872 = vmax.f32 %v845, 1e-24
    %v873 = vmax.f32 %v847, 1e-24
    %v874 = vmax.f32 %v849, 1e-24
    %v875 = vmax.f32 %v851, 1e-24
    %v876 = vmax.f32 %v853, 1e-24
    %v877 = vmax.f32 %v855, 1e-24
    %v878 = vmax.f32 %v857, 1e-24
    %v879 = vmax.f32 %v859, 1e-24
    %v880 = vmax.f32 %v861, 1e-24
    %v881 = vmax.f32 %v863, 1e-24
    %v882 = vmax.f32 %v865, 1e-24
    %v883 = vmax.f32 %v867, 1e-24
    %v884 = vrsqrt.pop %v868
    %v885 = vrsqrt.pop %v869
    %v886 = vrsqrt.pop %v870
    %v887 = vrsqrt.pop %v871
    %v888 = vrsqrt.pop %v872
    %v889 = vrsqrt.pop %v873
    %v890 = vrsqrt.pop %v874
    %v891 = vrsqrt.pop %v875
    %v892 = vrsqrt.pop %v876
    %v893 = vrsqrt.pop %v877
    %v894 = vrsqrt.pop %v878
    %v895 = vrsqrt.pop %v879
    %v896 = vrsqrt.pop %v880
    %v897 = vrsqrt.pop %v881
    %v898 = vrsqrt.pop %v882
    %v899 = vrsqrt.pop %v883
    %v900 = vmul.f32 %v758, %v884
    %v901 = vmul.f32 %v761, %v885
    %v902 = vmul.f32 %v766, %v886
    %v903 = vmul.f32 %v769, %v887
    %v904 = vmul.f32 %v774, %v888
    %v905 = vmul.f32 %v777, %v889
    %v906 = vmul.f32 %v782, %v890
    %v907 = vmul.f32 %v785, %v891
    %v908 = vmul.f32 %v790, %v892
    %v909 = vmul.f32 %v793, %v893
    %v910 = vmul.f32 %v798, %v894
    %v911 = vmul.f32 %v801, %v895
    %v912 = vmul.f32 %v806, %v896
    %v913 = vmul.f32 %v809, %v897
    %v914 = vmul.f32 %v814, %v898
    %v915 = vmul.f32 %v817, %v899
    %916 = vst [vmem:[#allocation2] sm:$0xff] %v900
    %917 = vst [vmem:[#allocation2 + $0x8] sm:$0xff] %v901
    %918 = vst [vmem:[#allocation2 + $0x10] sm:$0xff] %v902
    %919 = vst [vmem:[#allocation2 + $0x18] sm:$0xff] %v903
    %920 = vst [vmem:[#allocation2 + $0x20] sm:$0xff] %v904
    %921 = vst [vmem:[#allocation2 + $0x28] sm:$0xff] %v905
    %922 = vst [vmem:[#allocation2 + $0x30] sm:$0xff] %v906
    %923 = vst [vmem:[#allocation2 + $0x38] sm:$0xff] %v907
    %924 = vst [vmem:[#allocation2 + $0x40] sm:$0xff] %v908
    %925 = vst [vmem:[#allocation2 + $0x48] sm:$0xff] %v909
    %926 = vst [vmem:[#allocation2 + $0x50] sm:$0xff] %v910
    %927 = vst [vmem:[#allocation2 + $0x58] sm:$0xff] %v911
    %928 = vst [vmem:[#allocation2 + $0x60] sm:$0xff] %v912
    %929 = vst [vmem:[#allocation2 + $0x68] sm:$0xff] %v913
    %930 = vst [vmem:[#allocation2 + $0x70] sm:$0xff] %v914
    %931 = vst [vmem:[#allocation2 + $0x78] sm:$0xff] %v915
    %v932 = vpack.c.bf16 %v901, %v900
    %v933 = vpack.c.bf16 %v903, %v902
    %v934 = vpack.c.bf16 %v905, %v904
    %v935 = vpack.c.bf16 %v907, %v906
    %v936 = vpack.c.bf16 %v909, %v908
    %v937 = vpack.c.bf16 %v911, %v910
    %v938 = vpack.c.bf16 %v913, %v912
    %v939 = vpack.c.bf16 %v915, %v914
    %v940 = vld [vmem:[%s6] sm:$0xf]
    %v941 = vld [vmem:[%s6 + $0x4] sm:$0xf]
    %v942 = vld [vmem:[%s6 + $0x8] sm:$0xf]
    %v943 = vld [vmem:[%s6 + $0xc] sm:$0xf]
    %v944 = vld [vmem:[%s6 + $0x10] sm:$0xf]
    %v945 = vld [vmem:[%s6 + $0x14] sm:$0xf]
    %v946 = vld [vmem:[%s6 + $0x18] sm:$0xf]
    %v947 = vld [vmem:[%s6 + $0x1c] sm:$0xf]
    %v948 = vld [vmem:[%s6 + $0x20] sm:$0xf]
    %v949 = vld [vmem:[%s6 + $0x24] sm:$0xf]
    %v950 = vld [vmem:[%s6 + $0x28] sm:$0xf]
    %v951 = vld [vmem:[%s6 + $0x2c] sm:$0xf]
    %v952 = vld [vmem:[%s6 + $0x30] sm:$0xf]
    %v953 = vld [vmem:[%s6 + $0x34] sm:$0xf]
    %v954 = vld [vmem:[%s6 + $0x38] sm:$0xf]
    %v955 = vld [vmem:[%s6 + $0x3c] sm:$0xf]
    %v972 = vunpack.c.l.b16 %v940
    %v973 = vunpack.c.l.b16 %v941
    %v974 = vunpack.c.l.b16 %v942
    %v975 = vunpack.c.l.b16 %v943
    %v976 = vunpack.c.l.b16 %v944
    %v977 = vunpack.c.l.b16 %v945
    %v978 = vunpack.c.l.b16 %v946
    %v979 = vunpack.c.l.b16 %v947
    %v980 = vunpack.c.l.b16 %v948
    %v981 = vunpack.c.l.b16 %v949
    %v982 = vunpack.c.l.b16 %v950
    %v983 = vunpack.c.l.b16 %v951
    %v984 = vunpack.c.l.b16 %v952
    %v985 = vunpack.c.l.b16 %v953
    %v986 = vunpack.c.l.b16 %v954
    %v987 = vunpack.c.l.b16 %v955
    %v988 = vpack.c.b16 %v973, %v972
    %v989 = vpack.c.b16 %v975, %v974
    %v990 = vpack.c.b16 %v977, %v976
    %v991 = vpack.c.b16 %v979, %v978
    %v992 = vpack.c.b16 %v981, %v980
    %v993 = vpack.c.b16 %v983, %v982
    %v994 = vpack.c.b16 %v985, %v984
    %v995 = vpack.c.b16 %v987, %v986
    %1004 = vmatprep.subr.bf16.mxu0 0
    %1005 = vmatpush1.bf16.msra.mxu0 %v988
    %1006 = vmatprep.subr.bf16.mxu0 0
    %1007 = vmatpush1.bf16.msra.mxu0 %v989
    %1008 = vmatprep.subr.bf16.mxu0 0
    %1009 = vmatpush1.bf16.msra.mxu0 %v990
    %1010 = vmatprep.subr.bf16.mxu0 0
    %1011 = vmatpush1.bf16.msra.mxu0 %v991
    %1012 = vmatprep.subr.bf16.mxu0 0
    %1013 = vmatpush1.bf16.msra.mxu0 %v992
    %1014 = vmatprep.subr.bf16.mxu0 0
    %1015 = vmatpush1.bf16.msra.mxu0 %v993
    %1016 = vmatprep.subr.bf16.mxu0 0
    %1017 = vmatpush1.bf16.msra.mxu0 %v994
    %1018 = vmatprep.subr.bf16.mxu0 0
    %1019 = vmatpush1.bf16.msra.mxu0 %v995
    %1020 = vmatprep.subr.bf16.mxu0 0
    %1021 = vmatpush1.bf16.msra.mxu0 0
    %1022 = vmatprep.subr.bf16.mxu0 0
    %1023 = vmatpush1.bf16.msra.mxu0 0
    %1024 = vmatprep.subr.bf16.mxu0 0
    %1025 = vmatpush1.bf16.msra.mxu0 0
    %1026 = vmatprep.subr.bf16.mxu0 0
    %1027 = vmatpush1.bf16.msra.mxu0 0
    %1028 = vmatprep.subr.bf16.mxu0 0
    %1029 = vmatpush1.bf16.msra.mxu0 0
    %1030 = vmatprep.subr.bf16.mxu0 0
    %1031 = vmatpush1.bf16.msra.mxu0 0
    %1032 = vmatprep.subr.bf16.mxu0 0
    %1033 = vmatpush1.bf16.msra.mxu0 0
    %1034 = vmatprep.subr.bf16.mxu0 0
    %1035 = vmatpush1.bf16.msra.mxu0 0
    %1036 = vmatprep.mubr.bf16.mxu0 0
    %1037 = vmatmul.mubr.bf16.gmra.mrb[0].mxu0 %v932
    %v1038 = vpop.f32.mrb[0].mxu0
    %v1039 = vadd.f32 0.0, %v1038
    %v1040 = vpop.f32.mrb[0].mxu0
    %v1041 = vpop.f32.mrb[0].mxu0
    %v1042 = vadd.f32 0.0, %v1041
    %v1043 = vpop.f32.mrb[0].mxu0
    %1044 = vmatprep.mubr.bf16.mxu0 0
    %1045 = vmatmul.mubr.bf16.gmra.mrb[0].mxu0 %v933
    %v1046 = vpop.f32.mrb[0].mxu0
    %v1047 = vadd.f32 0.0, %v1046
    %v1048 = vpop.f32.mrb[0].mxu0
    %v1049 = vpop.f32.mrb[0].mxu0
    %v1050 = vadd.f32 0.0, %v1049
    %v1051 = vpop.f32.mrb[0].mxu0
    %1052 = vmatprep.mubr.bf16.mxu0 0
    %1053 = vmatmul.mubr.bf16.gmra.mrb[0].mxu0 %v934
    %v1054 = vpop.f32.mrb[0].mxu0
    %v1055 = vadd.f32 0.0, %v1054
    %v1056 = vpop.f32.mrb[0].mxu0
    %v1057 = vpop.f32.mrb[0].mxu0
    %v1058 = vadd.f32 0.0, %v1057
    %v1059 = vpop.f32.mrb[0].mxu0
    %1060 = vmatprep.mubr.bf16.mxu0 0
    %1061 = vmatmul.mubr.bf16.gmra.mrb[0].mxu0 %v935
    %v1062 = vpop.f32.mrb[0].mxu0
    %v1063 = vadd.f32 0.0, %v1062
    %v1064 = vpop.f32.mrb[0].mxu0
    %v1065 = vpop.f32.mrb[0].mxu0
    %v1066 = vadd.f32 0.0, %v1065
    %v1067 = vpop.f32.mrb[0].mxu0
    %1068 = vmatprep.mubr.bf16.mxu0 0
    %1069 = vmatmul.mubr.bf16.gmra.mrb[0].mxu0 %v936
    %v1070 = vpop.f32.mrb[0].mxu0
    %v1071 = vadd.f32 0.0, %v1070
    %v1072 = vpop.f32.mrb[0].mxu0
    %v1073 = vpop.f32.mrb[0].mxu0
    %v1074 = vadd.f32 0.0, %v1073
    %v1075 = vpop.f32.mrb[0].mxu0
    %1076 = vmatprep.mubr.bf16.mxu0 0
    %1077 = vmatmul.mubr.bf16.gmra.mrb[0].mxu0 %v937
    %v1078 = vpop.f32.mrb[0].mxu0
    %v1079 = vadd.f32 0.0, %v1078
    %v1080 = vpop.f32.mrb[0].mxu0
    %v1081 = vpop.f32.mrb[0].mxu0
    %v1082 = vadd.f32 0.0, %v1081
    %v1083 = vpop.f32.mrb[0].mxu0
    %1084 = vmatprep.mubr.bf16.mxu0 0
    %1085 = vmatmul.mubr.bf16.gmra.mrb[0].mxu0 %v938
    %v1086 = vpop.f32.mrb[0].mxu0
    %v1087 = vadd.f32 0.0, %v1086
    %v1088 = vpop.f32.mrb[0].mxu0
    %v1089 = vpop.f32.mrb[0].mxu0
    %v1090 = vadd.f32 0.0, %v1089
    %v1091 = vpop.f32.mrb[0].mxu0
    %1092 = vmatprep.mubr.bf16.mxu0 0
    %1093 = vmatmul.mubr.bf16.gmra.mrb[0].mxu0 %v939
    %v1094 = vpop.f32.mrb[0].mxu0
    %v1095 = vadd.f32 0.0, %v1094
    %v1096 = vpop.f32.mrb[0].mxu0
    %v1097 = vpop.f32.mrb[0].mxu0
    %v1098 = vadd.f32 0.0, %v1097
    %v1099 = vpop.f32.mrb[0].mxu0
    %1100 = vdwg.mxu0
    %v1101 = vmax.f32 %v1039, 0.0
    %v1102 = vmax.f32 %v1042, 0.0
    %v1103 = vmax.f32 %v1047, 0.0
    %v1104 = vmax.f32 %v1050, 0.0
    %v1105 = vmax.f32 %v1055, 0.0
    %v1106 = vmax.f32 %v1058, 0.0
    %v1107 = vmax.f32 %v1063, 0.0
    %v1108 = vmax.f32 %v1066, 0.0
    %v1109 = vmax.f32 %v1071, 0.0
    %v1110 = vmax.f32 %v1074, 0.0
    %v1111 = vmax.f32 %v1079, 0.0
    %v1112 = vmax.f32 %v1082, 0.0
    %v1113 = vmax.f32 %v1087, 0.0
    %v1114 = vmax.f32 %v1090, 0.0
    %v1115 = vmax.f32 %v1095, 0.0
    %v1116 = vmax.f32 %v1098, 0.0
    %v1117 = vpack.c.bf16 %v1102, %v1101
    %v1118 = vpack.c.bf16 %v1104, %v1103
    %v1119 = vpack.c.bf16 %v1106, %v1105
    %v1120 = vpack.c.bf16 %v1108, %v1107
    %v1121 = vpack.c.bf16 %v1110, %v1109
    %v1122 = vpack.c.bf16 %v1112, %v1111
    %v1123 = vpack.c.bf16 %v1114, %v1113
    %v1124 = vpack.c.bf16 %v1116, %v1115
    %v1125 = vld [vmem:[%s7] sm:$0xf]
    %v1126 = vld [vmem:[%s7 + $0x4] sm:$0xf]
    %v1127 = vld [vmem:[%s7 + $0x8] sm:$0xf]
    %v1128 = vld [vmem:[%s7 + $0xc] sm:$0xf]
    %v1129 = vld [vmem:[%s7 + $0x10] sm:$0xf]
    %v1130 = vld [vmem:[%s7 + $0x14] sm:$0xf]
    %v1131 = vld [vmem:[%s7 + $0x18] sm:$0xf]
    %v1132 = vld [vmem:[%s7 + $0x1c] sm:$0xf]
    %v1133 = vld [vmem:[%s7 + $0x20] sm:$0xf]
    %v1134 = vld [vmem:[%s7 + $0x24] sm:$0xf]
    %v1135 = vld [vmem:[%s7 + $0x28] sm:$0xf]
    %v1136 = vld [vmem:[%s7 + $0x2c] sm:$0xf]
    %v1137 = vld [vmem:[%s7 + $0x30] sm:$0xf]
    %v1138 = vld [vmem:[%s7 + $0x34] sm:$0xf]
    %v1139 = vld [vmem:[%s7 + $0x38] sm:$0xf]
    %v1140 = vld [vmem:[%s7 + $0x3c] sm:$0xf]
    %v1157 = vunpack.c.l.b16 %v1125
    %v1158 = vunpack.c.l.b16 %v1126
    %v1159 = vunpack.c.l.b16 %v1127
    %v1160 = vunpack.c.l.b16 %v1128
    %v1161 = vunpack.c.l.b16 %v1129
    %v1162 = vunpack.c.l.b16 %v1130
    %v1163 = vunpack.c.l.b16 %v1131
    %v1164 = vunpack.c.l.b16 %v1132
    %v1165 = vunpack.c.l.b16 %v1133
    %v1166 = vunpack.c.l.b16 %v1134
    %v1167 = vunpack.c.l.b16 %v1135
    %v1168 = vunpack.c.l.b16 %v1136
    %v1169 = vunpack.c.l.b16 %v1137
    %v1170 = vunpack.c.l.b16 %v1138
    %v1171 = vunpack.c.l.b16 %v1139
    %v1172 = vunpack.c.l.b16 %v1140
    %v1173 = vpack.c.b16 %v1158, %v1157
    %v1174 = vpack.c.b16 %v1160, %v1159
    %v1175 = vpack.c.b16 %v1162, %v1161
    %v1176 = vpack.c.b16 %v1164, %v1163
    %v1177 = vpack.c.b16 %v1166, %v1165
    %v1178 = vpack.c.b16 %v1168, %v1167
    %v1179 = vpack.c.b16 %v1170, %v1169
    %v1180 = vpack.c.b16 %v1172, %v1171
    %1189 = vmatprep.subr.bf16.mxu0 0
    %1190 = vmatpush1.bf16.msra.mxu0 %v1173
    %1191 = vmatprep.subr.bf16.mxu0 0
    %1192 = vmatpush1.bf16.msra.mxu0 %v1174
    %1193 = vmatprep.subr.bf16.mxu0 0
    %1194 = vmatpush1.bf16.msra.mxu0 %v1175
    %1195 = vmatprep.subr.bf16.mxu0 0
    %1196 = vmatpush1.bf16.msra.mxu0 %v1176
    %1197 = vmatprep.subr.bf16.mxu0 0
    %1198 = vmatpush1.bf16.msra.mxu0 %v1177
    %1199 = vmatprep.subr.bf16.mxu0 0
    %1200 = vmatpush1.bf16.msra.mxu0 %v1178
    %1201 = vmatprep.subr.bf16.mxu0 0
    %1202 = vmatpush1.bf16.msra.mxu0 %v1179
    %1203 = vmatprep.subr.bf16.mxu0 0
    %1204 = vmatpush1.bf16.msra.mxu0 %v1180
    %1205 = vmatprep.subr.bf16.mxu0 0
    %1206 = vmatpush1.bf16.msra.mxu0 0
    %1207 = vmatprep.subr.bf16.mxu0 0
    %1208 = vmatpush1.bf16.msra.mxu0 0
    %1209 = vmatprep.subr.bf16.mxu0 0
    %1210 = vmatpush1.bf16.msra.mxu0 0
    %1211 = vmatprep.subr.bf16.mxu0 0
    %1212 = vmatpush1.bf16.msra.mxu0 0
    %1213 = vmatprep.subr.bf16.mxu0 0
    %1214 = vmatpush1.bf16.msra.mxu0 0
    %1215 = vmatprep.subr.bf16.mxu0 0
    %1216 = vmatpush1.bf16.msra.mxu0 0
    %1217 = vmatprep.subr.bf16.mxu0 0
    %1218 = vmatpush1.bf16.msra.mxu0 0
    %1219 = vmatprep.subr.bf16.mxu0 0
    %1220 = vmatpush1.bf16.msra.mxu0 0
    %1221 = vmatprep.mubr.bf16.mxu0 0
    %1222 = vmatmul.mubr.bf16.gmra.mrb[0].mxu0 %v1117
    %v1223 = vpop.f32.mrb[0].mxu0
    %v1224 = vadd.f32 0.0, %v1223
    %v1225 = vpop.f32.mrb[0].mxu0
    %v1226 = vpop.f32.mrb[0].mxu0
    %v1227 = vadd.f32 0.0, %v1226
    %v1228 = vpop.f32.mrb[0].mxu0
    %1229 = vmatprep.mubr.bf16.mxu0 0
    %1230 = vmatmul.mubr.bf16.gmra.mrb[0].mxu0 %v1118
    %v1231 = vpop.f32.mrb[0].mxu0
    %v1232 = vadd.f32 0.0, %v1231
    %v1233 = vpop.f32.mrb[0].mxu0
    %v1234 = vpop.f32.mrb[0].mxu0
    %v1235 = vadd.f32 0.0, %v1234
    %v1236 = vpop.f32.mrb[0].mxu0
    %1237 = vmatprep.mubr.bf16.mxu0 0
    %1238 = vmatmul.mubr.bf16.gmra.mrb[0].mxu0 %v1119
    %v1239 = vpop.f32.mrb[0].mxu0
    %v1240 = vadd.f32 0.0, %v1239
    %v1241 = vpop.f32.mrb[0].mxu0
    %v1242 = vpop.f32.mrb[0].mxu0
    %v1243 = vadd.f32 0.0, %v1242
    %v1244 = vpop.f32.mrb[0].mxu0
    %1245 = vmatprep.mubr.bf16.mxu0 0
    %1246 = vmatmul.mubr.bf16.gmra.mrb[0].mxu0 %v1120
    %v1247 = vpop.f32.mrb[0].mxu0
    %v1248 = vadd.f32 0.0, %v1247
    %v1249 = vpop.f32.mrb[0].mxu0
    %v1250 = vpop.f32.mrb[0].mxu0
    %v1251 = vadd.f32 0.0, %v1250
    %v1252 = vpop.f32.mrb[0].mxu0
    %1253 = vmatprep.mubr.bf16.mxu0 0
    %1254 = vmatmul.mubr.bf16.gmra.mrb[0].mxu0 %v1121
    %v1255 = vpop.f32.mrb[0].mxu0
    %v1256 = vadd.f32 0.0, %v1255
    %v1257 = vpop.f32.mrb[0].mxu0
    %v1258 = vpop.f32.mrb[0].mxu0
    %v1259 = vadd.f32 0.0, %v1258
    %v1260 = vpop.f32.mrb[0].mxu0
    %1261 = vmatprep.mubr.bf16.mxu0 0
    %1262 = vmatmul.mubr.bf16.gmra.mrb[0].mxu0 %v1122
    %v1263 = vpop.f32.mrb[0].mxu0
    %v1264 = vadd.f32 0.0, %v1263
    %v1265 = vpop.f32.mrb[0].mxu0
    %v1266 = vpop.f32.mrb[0].mxu0
    %v1267 = vadd.f32 0.0, %v1266
    %v1268 = vpop.f32.mrb[0].mxu0
    %1269 = vmatprep.mubr.bf16.mxu0 0
    %1270 = vmatmul.mubr.bf16.gmra.mrb[0].mxu0 %v1123
    %v1271 = vpop.f32.mrb[0].mxu0
    %v1272 = vadd.f32 0.0, %v1271
    %v1273 = vpop.f32.mrb[0].mxu0
    %v1274 = vpop.f32.mrb[0].mxu0
    %v1275 = vadd.f32 0.0, %v1274
    %v1276 = vpop.f32.mrb[0].mxu0
    %1277 = vmatprep.mubr.bf16.mxu0 0
    %1278 = vmatmul.mubr.bf16.gmra.mrb[0].mxu0 %v1124
    %v1279 = vpop.f32.mrb[0].mxu0
    %v1280 = vadd.f32 0.0, %v1279
    %v1281 = vpop.f32.mrb[0].mxu0
    %v1282 = vpop.f32.mrb[0].mxu0
    %v1283 = vadd.f32 0.0, %v1282
    %v1284 = vpop.f32.mrb[0].mxu0
    %1285 = vdwg.mxu0
    %v1286 = vxor.u32 %v1224, 2147483648
    %v1287 = vxor.u32 %v1227, 2147483648
    %v1288 = vxor.u32 %v1232, 2147483648
    %v1289 = vxor.u32 %v1235, 2147483648
    %v1290 = vxor.u32 %v1240, 2147483648
    %v1291 = vxor.u32 %v1243, 2147483648
    %v1292 = vxor.u32 %v1248, 2147483648
    %v1293 = vxor.u32 %v1251, 2147483648
    %v1294 = vxor.u32 %v1256, 2147483648
    %v1295 = vxor.u32 %v1259, 2147483648
    %v1296 = vxor.u32 %v1264, 2147483648
    %v1297 = vxor.u32 %v1267, 2147483648
    %v1298 = vxor.u32 %v1272, 2147483648
    %v1299 = vxor.u32 %v1275, 2147483648
    %v1300 = vxor.u32 %v1280, 2147483648
    %v1301 = vxor.u32 %v1283, 2147483648
    %v1302 = vmul.f32 %v1286, 1.442695
    %v1303 = vpow.pop %v1302
    %v1304 = vmul.f32 %v1287, 1.442695
    %v1305 = vpow.pop %v1304
    %v1306 = vmul.f32 %v1288, 1.442695
    %v1307 = vpow.pop %v1306
    %v1308 = vmul.f32 %v1289, 1.442695
    %v1309 = vpow.pop %v1308
    %v1310 = vmul.f32 %v1290, 1.442695
    %v1311 = vpow.pop %v1310
    %v1312 = vmul.f32 %v1291, 1.442695
    %v1313 = vpow.pop %v1312
    %v1314 = vmul.f32 %v1292, 1.442695
    %v1315 = vpow.pop %v1314
    %v1316 = vmul.f32 %v1293, 1.442695
    %v1317 = vpow.pop %v1316
    %v1318 = vmul.f32 %v1294, 1.442695
    %v1319 = vpow.pop %v1318
    %v1320 = vmul.f32 %v1295, 1.442695
    %v1321 = vpow.pop %v1320
    %v1322 = vmul.f32 %v1296, 1.442695
    %v1323 = vpow.pop %v1322
    %v1324 = vmul.f32 %v1297, 1.442695
    %v1325 = vpow.pop %v1324
    %v1326 = vmul.f32 %v1298, 1.442695
    %v1327 = vpow.pop %v1326
    %v1328 = vmul.f32 %v1299, 1.442695
    %v1329 = vpow.pop %v1328
    %v1330 = vmul.f32 %v1300, 1.442695
    %v1331 = vpow.pop %v1330
    %v1332 = vmul.f32 %v1301, 1.442695
    %v1333 = vpow.pop %v1332
    %v1334 = vadd.f32 %v1303, 1.0
    %v1335 = vadd.f32 %v1305, 1.0
    %v1336 = vadd.f32 %v1307, 1.0
    %v1337 = vadd.f32 %v1309, 1.0
    %v1338 = vadd.f32 %v1311, 1.0
    %v1339 = vadd.f32 %v1313, 1.0
    %v1340 = vadd.f32 %v1315, 1.0
    %v1341 = vadd.f32 %v1317, 1.0
    %v1342 = vadd.f32 %v1319, 1.0
    %v1343 = vadd.f32 %v1321, 1.0
    %v1344 = vadd.f32 %v1323, 1.0
    %v1345 = vadd.f32 %v1325, 1.0
    %v1346 = vadd.f32 %v1327, 1.0
    %v1347 = vadd.f32 %v1329, 1.0
    %v1348 = vadd.f32 %v1331, 1.0
    %v1349 = vadd.f32 %v1333, 1.0
    %v1350 = vrcp.pop %v1334
    %v1351 = vmul.f32 1.0, %v1350
    %v1352 = vrcp.pop %v1335
    %v1353 = vmul.f32 1.0, %v1352
    %v1354 = vrcp.pop %v1336
    %v1355 = vmul.f32 1.0, %v1354
    %v1356 = vrcp.pop %v1337
    %v1357 = vmul.f32 1.0, %v1356
    %v1358 = vrcp.pop %v1338
    %v1359 = vmul.f32 1.0, %v1358
    %v1360 = vrcp.pop %v1339
    %v1361 = vmul.f32 1.0, %v1360
    %v1362 = vrcp.pop %v1340
    %v1363 = vmul.f32 1.0, %v1362
    %v1364 = vrcp.pop %v1341
    %v1365 = vmul.f32 1.0, %v1364
    %v1366 = vrcp.pop %v1342
    %v1367 = vmul.f32 1.0, %v1366
    %v1368 = vrcp.pop %v1343
    %v1369 = vmul.f32 1.0, %v1368
    %v1370 = vrcp.pop %v1344
    %v1371 = vmul.f32 1.0, %v1370
    %v1372 = vrcp.pop %v1345
    %v1373 = vmul.f32 1.0, %v1372
    %v1374 = vrcp.pop %v1346
    %v1375 = vmul.f32 1.0, %v1374
    %v1376 = vrcp.pop %v1347
    %v1377 = vmul.f32 1.0, %v1376
    %v1378 = vrcp.pop %v1348
    %v1379 = vmul.f32 1.0, %v1378
    %v1380 = vrcp.pop %v1349
    %v1381 = vmul.f32 1.0, %v1380
    %vm1382 = vcmask 7168
    %1383 = vst.msk [vmem:[%s9] sm:$0xff] %vm1382, %v1351
    %1384 = vst.msk [vmem:[%s9 + $0x8] sm:$0xff] %vm1382, %v1353
    %1385 = vst.msk [vmem:[%s9 + $0x10] sm:$0xff] %vm1382, %v1355
    %1386 = vst.msk [vmem:[%s9 + $0x18] sm:$0xff] %vm1382, %v1357
    %1387 = vst.msk [vmem:[%s9 + $0x20] sm:$0xff] %vm1382, %v1359
    %1388 = vst.msk [vmem:[%s9 + $0x28] sm:$0xff] %vm1382, %v1361
    %1389 = vst.msk [vmem:[%s9 + $0x30] sm:$0xff] %vm1382, %v1363
    %1390 = vst.msk [vmem:[%s9 + $0x38] sm:$0xff] %vm1382, %v1365
    %1391 = vst.msk [vmem:[%s9 + $0x40] sm:$0xff] %vm1382, %v1367
    %1392 = vst.msk [vmem:[%s9 + $0x48] sm:$0xff] %vm1382, %v1369
    %1393 = vst.msk [vmem:[%s9 + $0x50] sm:$0xff] %vm1382, %v1371
    %1394 = vst.msk [vmem:[%s9 + $0x58] sm:$0xff] %vm1382, %v1373
    %1395 = vst.msk [vmem:[%s9 + $0x60] sm:$0xff] %vm1382, %v1375
    %1396 = vst.msk [vmem:[%s9 + $0x68] sm:$0xff] %vm1382, %v1377
    %1397 = vst.msk [vmem:[%s9 + $0x70] sm:$0xff] %vm1382, %v1379
    %1398 = vst.msk [vmem:[%s9 + $0x78] sm:$0xff] %vm1382, %v1381
    // Predicated region
    $region34: #{wingnn_forward.1} parent=1 // pred_check
      _
    $region35: #{wingnn_forward.1} parent=1 // pred_check_branch
      %1400 = sbr.rel (0) target = $region37
    $region36: #{wingnn_forward.1} parent=1 // pred_region
      %s1402 = ssub.s32 2048, 2048
      %1403 = vsyncadd [#allocation3], %s1402
      %s1404 = sshll.u32 [#allocation2], 4
      %s1405 = int_to_ptr.vmem [resolvable:$true] %s1404
      %1410 = dma.vmem_to_hbm [thread:$0]  %s1405, 2048, %s8, [#allocation3], 128, 128, 8
    $region37: #{wingnn_forward.1} parent=1 // pred_fallthru
      _
    // Predicated region
    $region38: #{wingnn_forward.1} parent=1 // pred_check
      _
    $region39: #{wingnn_forward.1} parent=1 // pred_check_branch
      %1412 = sbr.rel (0) target = $region41
    $region40: #{wingnn_forward.1} parent=1 // pred_region
      _
    $region41: #{wingnn_forward.1} parent=1 // pred_fallthru
      _
    // Predicated region
    $region42: #{wingnn_forward.1} parent=1 // pred_check
      _
    $region43: #{wingnn_forward.1} parent=1 // pred_check_branch
      %1414 = sbr.rel (0) target = $region45
    $region44: #{wingnn_forward.1} parent=1 // pred_region
      %1415 = dma.done [#allocation3], 2048
    $region45: #{wingnn_forward.1} parent=1 // pred_fallthru
      _
    // Predicated region
    $region46: #{wingnn_forward.1} parent=1 // pred_check
      _
    $region47: #{wingnn_forward.1} parent=1 // pred_check_branch
      %1417 = sbr.rel (0) target = $region49
    $region48: #{wingnn_forward.1} parent=1 // pred_region
      _
    $region49: #{wingnn_forward.1} parent=1 // pred_fallthru
      _
    %1418 = vsyncpa [#allocation3], 1

</llo_original>
